<compile_context>
chip_gen: v6e
topology: v6e:2x2x1
jax: 0.10.0
libtpu: 0.0.40
codegen_flags: <defaults>
</compile_context>

<pallas_src>
import jax
import jax.numpy as jnp
from jax.experimental import pallas as pl
from jax.experimental.pallas import tpu as pltpu

# Raised scoped-VMEM ceiling (v5e default is 16 MiB).  Safe on v6e/v7x too.
# Raise further (and prefer bf16 weights) if resident W_hh grows large.
VMEM_LIMIT_BYTES = 32 * 1024 * 1024


# --------------------------------------------------------------------------
# One-time parameter preparation (hoisted out of the per-step wrappers).
# --------------------------------------------------------------------------
def _reorder_gates(m, H):
    """Permute gate columns from PyTorch [i, f, g, o] to [i, f, o, g]."""
    return jnp.concatenate(
        [m[..., :2 * H], m[..., 3 * H:], m[..., 2 * H:3 * H]], axis=-1)


def prepare_params(w_ih, w_hh, b_ih, b_hh, mxu_dtype=None):
    """Reorder gates, pre-sum bias, optionally cast weights for the MXU.

    Returns (w_ih_p, w_hh_p, b_p) with gate order [i, f, o, g] along 4H.
    `mxu_dtype=jnp.bfloat16` halves weight VMEM/DMA and runs the MXU at
    native bf16 rate; gate math and accumulation stay f32.
    """
    H = w_hh.shape[0]
    b = (jnp.reshape(b_ih, (1, 4 * H)).astype(jnp.float32)
         + jnp.reshape(b_hh, (1, 4 * H)).astype(jnp.float32))
    w_ih_p = _reorder_gates(w_ih, H)
    w_hh_p = _reorder_gates(w_hh, H)
    b_p = _reorder_gates(b, H)
    if mxu_dtype is not None:
        w_ih_p = w_ih_p.astype(mxu_dtype)
        w_hh_p = w_hh_p.astype(mxu_dtype)
    return w_ih_p, w_hh_p, b_p


# --------------------------------------------------------------------------
# Single-step LSTM cell.
# --------------------------------------------------------------------------
def lstm_cell_kernel(x_ref, h0_ref, c0_ref, wih_ref, whh_ref, b_ref,
                     h_out, c_out):
    """Two MXU dots summed into one f32 accumulator + fused gate math.

    Gate layout along 4H is [i, f, o, g] (pre-permuted in prepare_params),
    so one sigmoid covers the first 3H lanes and one tanh the last H.
    """
    H = c0_ref.shape[-1]
    gates = (jnp.dot(x_ref[...], wih_ref[...],
                     preferred_element_type=jnp.float32)
             + jnp.dot(h0_ref[...], whh_ref[...],
                       preferred_element_type=jnp.float32)
             + b_ref[...])
    sig = jax.nn.sigmoid(gates[:, :3 * H])          # [i | f | o], one EUP pass
    g_g = jnp.tanh(gates[:, 3 * H:])                # g, one EUP pass
    c1 = sig[:, H:2 * H] * c0_ref[...].astype(jnp.float32) + sig[:, :H] * g_g
    h1 = sig[:, 2 * H:3 * H] * jnp.tanh(c1)
    h_out[...] = h1.astype(h_out.dtype)             # direct stores, no concat
    c_out[...] = c1.astype(c_out.dtype)


def lstm_cell(x, h0, c0, params, *, batch_block=None):
    """One LSTM step.  `params` comes from prepare_params()."""
    w_ih_p, w_hh_p, b_p = params
    B, I = x.shape
    H = h0.shape[-1]
    out_dtype = h0.dtype
    mxu_dt = w_ih_p.dtype

    bt = B if batch_block is None else int(batch_block)
    grid = (-(-B // bt),)

    h_out, c_out = pl.pallas_call(
        lstm_cell_kernel,
        out_shape=(jax.ShapeDtypeStruct((B, H), out_dtype),
                   jax.ShapeDtypeStruct((B, H), out_dtype)),
        grid_spec=pltpu.PrefetchScalarGridSpec(
            num_scalar_prefetch=0,
            grid=grid,
            in_specs=[
                pl.BlockSpec((bt, I), lambda i: (i, 0)),        # x  (tiled B)
                pl.BlockSpec((bt, H), lambda i: (i, 0)),        # h0
                pl.BlockSpec((bt, H), lambda i: (i, 0)),        # c0
                pl.BlockSpec((I, 4 * H), lambda i: (0, 0)),     # W_ih resident
                pl.BlockSpec((H, 4 * H), lambda i: (0, 0)),     # W_hh resident
                pl.BlockSpec((1, 4 * H), lambda i: (0, 0)),     # bias resident
            ],
            out_specs=[pl.BlockSpec((bt, H), lambda i: (i, 0)),
                       pl.BlockSpec((bt, H), lambda i: (i, 0))],
        ),
        compiler_params=pltpu.CompilerParams(
            dimension_semantics=("parallel",),
            vmem_limit_bytes=VMEM_LIMIT_BYTES),
    )(x.astype(mxu_dt), h0.astype(mxu_dt), c0, w_ih_p, w_hh_p, b_p)
    return h_out, c_out


# --------------------------------------------------------------------------
# Sequence-fused variant: input projection hoisted, recurrence chunked.
# Returns only (h_T, c_T); intermediate h_t are not emitted.
# --------------------------------------------------------------------------
def _make_seq_kernel(H, Tt, T_total, num_chunks, unroll):
    needs_mask = (num_chunks * Tt != T_total)

    def kernel(gx_ref, h0_ref, c0_ref, whh_ref, h_out, c_out, h_sc, c_sc):
        c_idx = pl.program_id(1)            # time-chunk axis (axis 0 = batch)

        @pl.when(c_idx == 0)
        def _():                            # (re)init state for this batch tile
            h_sc[...] = h0_ref[...].astype(jnp.float32)
            c_sc[...] = c0_ref[...].astype(jnp.float32)

        def body(t, carry):
            h, c = carry
            # Only the recurrent matmul per step; x-projection already in gx.
            gates = gx_ref[t] + jnp.dot(
                h.astype(whh_ref.dtype), whh_ref[...],
                preferred_element_type=jnp.float32)
            sig = jax.nn.sigmoid(gates[:, :3 * H])   # [i | f | o]
            g_g = jnp.tanh(gates[:, 3 * H:])         # g
            c1 = sig[:, H:2 * H] * c + sig[:, :H] * g_g
            h1 = sig[:, 2 * H:3 * H] * jnp.tanh(c1)
            if needs_mask:                           # padded tail steps
                valid = (c_idx * Tt + t) < T_total
                h1 = jnp.where(valid, h1, h)
                c1 = jnp.where(valid, c1, c)
            return h1, c1

        h_f, c_f = jax.lax.fori_loop(0, Tt, body, (h_sc[...], c_sc[...]),
                                     unroll=unroll)
        h_sc[...] = h_f
        c_sc[...] = c_f

        @pl.when(c_idx == num_chunks - 1)
        def _():
            h_out[...] = h_f.astype(h_out.dtype)     # direct stores, no concat
            c_out[...] = c_f.astype(c_out.dtype)

    return kernel


def lstm_sequence(x_seq, h0, c0, params, *, time_block=None, batch_block=None):
    """Run T LSTM steps; returns (h_T, c_T).  `params` from prepare_params()."""
    w_ih_p, w_hh_p, b_p = params
    T, B, I = x_seq.shape
    H = h0.shape[-1]
    out_dtype = h0.dtype

    # (1) Hoist the input projection out of the recurrence: one big matmul
    #     over all T*B rows (well-shaped for the MXU), bias folded in, f32.
    gx = (jnp.dot(x_seq.reshape(T * B, I).astype(w_ih_p.dtype), w_ih_p,
                  preferred_element_type=jnp.float32)
          + b_p).reshape(T, B, 4 * H)

    # (2) Chunk the time axis so per-grid-step overhead is amortized and the
    #     streamed gx chunk stays a few MiB (double-buffered by BlockSpec).
    if time_block is None:
        budget = 4 * 1024 * 1024
        time_block = max(1, min(T, budget // max(B * 4 * H * 4, 1)))
    Tt = int(time_block)
    num_chunks = -(-T // Tt)
    if num_chunks * Tt != T:                 # pad so no out-of-bounds blocks
        gx = jnp.pad(gx, ((0, num_chunks * Tt - T), (0, 0), (0, 0)))

    bt = B if batch_block is None else int(batch_block)
    num_btiles = -(-B // bt)
    unroll = Tt if Tt <= 8 else 8

    kernel = _make_seq_kernel(H, Tt, T, num_chunks, unroll)

    h_out, c_out = pl.pallas_call(
        kernel,
        out_shape=(jax.ShapeDtypeStruct((B, H), out_dtype),
                   jax.ShapeDtypeStruct((B, H), out_dtype)),
        grid_spec=pltpu.PrefetchScalarGridSpec(
            num_scalar_prefetch=0,
            grid=(num_btiles, num_chunks),
            in_specs=[
                pl.BlockSpec((Tt, bt, 4 * H), lambda b, c: (c, b, 0)),  # gx
                pl.BlockSpec((bt, H), lambda b, c: (b, 0)),             # h0
                pl.BlockSpec((bt, H), lambda b, c: (b, 0)),             # c0
                pl.BlockSpec((H, 4 * H), lambda b, c: (0, 0)),          # W_hh
            ],
            out_specs=[pl.BlockSpec((bt, H), lambda b, c: (b, 0)),
                       pl.BlockSpec((bt, H), lambda b, c: (b, 0))],
            scratch_shapes=[pltpu.VMEM((bt, H), jnp.float32),           # h state
                            pltpu.VMEM((bt, H), jnp.float32)],          # c state
        ),
        compiler_params=pltpu.CompilerParams(
            dimension_semantics=("parallel", "arbitrary"),
            vmem_limit_bytes=VMEM_LIMIT_BYTES),
    )(gx, h0, c0, w_hh_p)
    return h_out, c_out


# --------------------------------------------------------------------------
# Pure-JAX reference mirroring torch fused LSTM cell semantics (original
# [i, f, g, o] gate order, un-permuted parameters).
# --------------------------------------------------------------------------
def lstm_cell_ref(x, h0, c0, w_ih, w_hh, b_ih, b_hh, mxu_dtype=None):
    if mxu_dtype is not None:
        xm, hm = x.astype(mxu_dtype), h0.astype(mxu_dtype)
        wim, whm = w_ih.astype(mxu_dtype), w_hh.astype(mxu_dtype)
    else:
        xm, hm, wim, whm = x, h0, w_ih, w_hh
    H = h0.shape[-1]
    gates = (jnp.dot(xm, wim, preferred_element_type=jnp.float32)
             + jnp.dot(hm, whm, preferred_element_type=jnp.float32)
             + jnp.reshape(b_ih, (1, 4 * H)) + jnp.reshape(b_hh, (1, 4 * H)))
    i_g = jax.nn.sigmoid(gates[:, 0 * H:1 * H])
    f_g = jax.nn.sigmoid(gates[:, 1 * H:2 * H])
    g_g = jnp.tanh(gates[:, 2 * H:3 * H])
    o_g = jax.nn.sigmoid(gates[:, 3 * H:4 * H])
    c1 = f_g * c0 + i_g * g_g
    h1 = o_g * jnp.tanh(c1)
    return h1, c1


def init_params(key, input_size, hidden_size, dtype=jnp.float32):
    """Deterministic parameter init mirroring LSTMCell.init_weights()."""
    k_ih, k_hh = jax.random.split(key)
    stdv = 1.0 / jnp.sqrt(hidden_size)
    w_ih = jax.random.uniform(k_ih, (input_size, 4 * hidden_size), dtype=dtype,
                              minval=-stdv, maxval=stdv)
    a = jax.random.normal(k_hh, (hidden_size, 4 * hidden_size), jnp.float32)
    q, r = jnp.linalg.qr(a.T)                       # orthogonal init
    d = jnp.diag(r)
    q = q * jnp.where(d >= 0, 1.0, -1.0)[None, :]
    w_hh = q.T.astype(dtype)                        # (H, 4H)
    b_ih = jnp.zeros((1, 4 * hidden_size), dtype=dtype)
    b_hh = jnp.zeros((1, 4 * hidden_size), dtype=dtype)
    return w_ih, w_hh, b_ih, b_hh


if __name__ == "__main__":
    # TODO(synk): use_layernorm=True branch (LayerNorm on igates/hgates before
    # the fused cell) not implemented; the default has_bias=True path is what
    # these kernels reproduce.
    B, INPUT, HIDDEN, T = 8, 32, 32, 8

    key = jax.random.PRNGKey(0)
    k_x, k_h, k_c, k_p, k_seq = jax.random.split(key, 5)

    x = jax.random.normal(k_x, (B, INPUT), dtype=jnp.float32)
    h0 = jax.random.normal(k_h, (B, HIDDEN), dtype=jnp.float32)
    c0 = jax.random.normal(k_c, (B, HIDDEN), dtype=jnp.float32)
    w_ih, w_hh, b_ih, b_hh = init_params(k_p, INPUT, HIDDEN)

    params_f32 = prepare_params(w_ih, w_hh, b_ih, b_hh)
    params_bf16 = prepare_params(w_ih, w_hh, b_ih, b_hh,
                                 mxu_dtype=jnp.bfloat16)

    # --- single step, f32 MXU operands ---
    h1, c1 = lstm_cell(x, h0, c0, params_f32)
    jax.block_until_ready((h1, c1))
    h1_r, c1_r = lstm_cell_ref(x, h0, c0, w_ih, w_hh, b_ih, b_hh)
    assert jnp.allclose(h1, h1_r, atol=1e-5, rtol=1e-5)
    assert jnp.allclose(c1, c1_r, atol=1e-5, rtol=1e-5)

    # --- single step, bf16 MXU operands, f32 gate math ---
    h1b, c1b = lstm_cell(x, h0, c0, params_bf16)
    jax.block_until_ready((h1b, c1b))
    h1b_r, c1b_r = lstm_cell_ref(x, h0, c0, w_ih, w_hh, b_ih, b_hh,
                                 mxu_dtype=jnp.bfloat16)
    assert jnp.allclose(h1b, h1b_r, atol=5e-3, rtol=5e-3)
    assert jnp.allclose(c1b, c1b_r, atol=5e-3, rtol=5e-3)

    # --- sequence-fused, f32: whole T in one grid step (default chunking) ---
    x_seq = jax.random.normal(k_seq, (T, B, INPUT), dtype=jnp.float32)
    hT, cT = lstm_sequence(x_seq, h0, c0, params_f32)
    jax.block_until_ready((hT, cT))
    h_r, c_r = h0, c0
    for t in range(T):
        h_r, c_r = lstm_cell_ref(x_seq[t], h_r, c_r, w_ih, w_hh, b_ih, b_hh)
    assert jnp.allclose(hT, h_r, atol=1e-4, rtol=1e-4)
    assert jnp.allclose(cT, c_r, atol=1e-4, rtol=1e-4)

    # --- sequence-fused, f32, chunked time axis with masked tail (T % Tt != 0) ---
    hT2, cT2 = lstm_sequence(x_seq, h0, c0, params_f32, time_block=3)
    jax.block_until_ready((hT2, cT2))
    assert jnp.allclose(hT2, h_r, atol=1e-4, rtol=1e-4)
    assert jnp.allclose(cT2, c_r, atol=1e-4, rtol=1e-4)

    # --- sequence-fused, bf16 MXU operands ---
    hTb, cTb = lstm_sequence(x_seq, h0, c0, params_bf16)
    jax.block_until_ready((hTb, cTb))
    h_rb, c_rb = h0, c0
    for t in range(T):
        h_rb, c_rb = lstm_cell_ref(x_seq[t], h_rb, c_rb, w_ih, w_hh,
                                   b_ih, b_hh, mxu_dtype=jnp.bfloat16)
    assert jnp.allclose(hTb, h_rb, atol=5e-3, rtol=5e-3)
    assert jnp.allclose(cTb, c_rb, atol=5e-3, rtol=5e-3)

    print("KERNEL_OK")
</pallas_src>

<mosaic_0001>
module attributes {stable_mosaic.version = 11 : i64} {
  func.func @lstm_cell_kernel(%arg0: i32, %arg1: memref<8x32xf32, #tpu.memory_space<vmem>>, %arg2: memref<8x32xf32, #tpu.memory_space<vmem>>, %arg3: memref<8x32xf32, #tpu.memory_space<vmem>>, %arg4: memref<32x128xf32, #tpu.memory_space<vmem>>, %arg5: memref<32x128xf32, #tpu.memory_space<vmem>>, %arg6: memref<1x128xf32, #tpu.memory_space<vmem>>, %arg7: memref<8x32xf32, #tpu.memory_space<vmem>>, %arg8: memref<8x32xf32, #tpu.memory_space<vmem>>) attributes {dimension_semantics = [#tpu.dimension_semantics<parallel>], iteration_bounds = array<i64: 1>, scalar_prefetch = 0 : i64, scratch_operands = 0 : i64, tpu.core_type = #tpu.core_type<tc>, window_params = [{transform_indices = @transform_0, window_bounds = array<i64: 8, 32>}, {transform_indices = @transform_1, window_bounds = array<i64: 8, 32>}, {transform_indices = @transform_2, window_bounds = array<i64: 8, 32>}, {pipeline_mode = #tpu.pipeline_mode<synchronous>, transform_indices = @transform_3, window_bounds = array<i64: 32, 128>}, {pipeline_mode = #tpu.pipeline_mode<synchronous>, transform_indices = @transform_4, window_bounds = array<i64: 32, 128>}, {pipeline_mode = #tpu.pipeline_mode<synchronous>, transform_indices = @transform_5, window_bounds = array<i64: 1, 128>}, {transform_indices = @transform_6, window_bounds = array<i64: 8, 32>}, {transform_indices = @transform_7, window_bounds = array<i64: 8, 32>}]} {
    %c0 = arith.constant 0 : index
    %c0_0 = arith.constant 0 : index
    %0 = vector.load %arg1[%c0, %c0_0] : memref<8x32xf32, #tpu.memory_space<vmem>>, vector<8x32xf32>
    %c0_1 = arith.constant 0 : index
    %c0_2 = arith.constant 0 : index
    %1 = vector.load %arg4[%c0_1, %c0_2] : memref<32x128xf32, #tpu.memory_space<vmem>>, vector<32x128xf32>
    %cst = arith.constant dense<0.000000e+00> : vector<8x128xf32>
    %2 = tpu.matmul %0, %1, %cst {dimension_numbers = #tpu.dot_dimension_numbers<[1], [0], [0], [1], [0, 0, 1, 1], [], []>} : vector<8x32xf32>, vector<32x128xf32>, vector<8x128xf32> -> vector<8x128xf32>
    %c0_3 = arith.constant 0 : index
    %c0_4 = arith.constant 0 : index
    %3 = vector.load %arg2[%c0_3, %c0_4] : memref<8x32xf32, #tpu.memory_space<vmem>>, vector<8x32xf32>
    %c0_5 = arith.constant 0 : index
    %c0_6 = arith.constant 0 : index
    %4 = vector.load %arg5[%c0_5, %c0_6] : memref<32x128xf32, #tpu.memory_space<vmem>>, vector<32x128xf32>
    %cst_7 = arith.constant dense<0.000000e+00> : vector<8x128xf32>
    %5 = tpu.matmul %3, %4, %cst_7 {dimension_numbers = #tpu.dot_dimension_numbers<[1], [0], [0], [1], [0, 0, 1, 1], [], []>} : vector<8x32xf32>, vector<32x128xf32>, vector<8x128xf32> -> vector<8x128xf32>
    %6 = arith.addf %2, %5 : vector<8x128xf32>
    %c0_8 = arith.constant 0 : index
    %c0_9 = arith.constant 0 : index
    %7 = vector.load %arg6[%c0_8, %c0_9] : memref<1x128xf32, #tpu.memory_space<vmem>>, vector<1x128xf32>
    %8 = vector.broadcast %7 : vector<1x128xf32> to vector<8x128xf32>
    %9 = arith.addf %6, %8 : vector<8x128xf32>
    %10 = vector.extract_strided_slice %9 {offsets = [0, 0], sizes = [8, 96], strides = [1, 1]} : vector<8x128xf32> to vector<8x96xf32>
    %11 = arith.negf %10 : vector<8x96xf32>
    %12 = math.exp %11 : vector<8x96xf32>
    %cst_10 = arith.constant 1.000000e+00 : f32
    %13 = vector.broadcast %cst_10 : f32 to vector<8x96xf32>
    %14 = arith.addf %13, %12 : vector<8x96xf32>
    %15 = arith.divf %13, %14 : vector<8x96xf32>
    %16 = vector.extract_strided_slice %9 {offsets = [0, 96], sizes = [8, 32], strides = [1, 1]} : vector<8x128xf32> to vector<8x32xf32>
    %17 = math.tanh %16 : vector<8x32xf32>
    %18 = vector.extract_strided_slice %15 {offsets = [0, 32], sizes = [8, 32], strides = [1, 1]} : vector<8x96xf32> to vector<8x32xf32>
    %c0_11 = arith.constant 0 : index
    %c0_12 = arith.constant 0 : index
    %19 = vector.load %arg3[%c0_11, %c0_12] : memref<8x32xf32, #tpu.memory_space<vmem>>, vector<8x32xf32>
    %20 = arith.mulf %18, %19 : vector<8x32xf32>
    %21 = vector.extract_strided_slice %15 {offsets = [0, 0], sizes = [8, 32], strides = [1, 1]} : vector<8x96xf32> to vector<8x32xf32>
    %22 = arith.mulf %21, %17 : vector<8x32xf32>
    %23 = arith.addf %20, %22 : vector<8x32xf32>
    %24 = vector.extract_strided_slice %15 {offsets = [0, 64], sizes = [8, 32], strides = [1, 1]} : vector<8x96xf32> to vector<8x32xf32>
    %25 = math.tanh %23 : vector<8x32xf32>
    %26 = arith.mulf %24, %25 : vector<8x32xf32>
    %c0_13 = arith.constant 0 : index
    %c0_14 = arith.constant 0 : index
    %27 = vector.load %arg7[%c0_13, %c0_14] : memref<8x32xf32, #tpu.memory_space<vmem>>, vector<8x32xf32>
    tpu.vector_store %arg7[%c0_13, %c0_14], %26 {strides = array<i32>} : memref<8x32xf32, #tpu.memory_space<vmem>>, vector<8x32xf32>,
    %c0_15 = arith.constant 0 : index
    %c0_16 = arith.constant 0 : index
    %28 = vector.load %arg8[%c0_15, %c0_16] : memref<8x32xf32, #tpu.memory_space<vmem>>, vector<8x32xf32>
    tpu.vector_store %arg8[%c0_15, %c0_16], %23 {strides = array<i32>} : memref<8x32xf32, #tpu.memory_space<vmem>>, vector<8x32xf32>,
    return
  }
  func.func @transform_0(%arg0: i32) -> (i32, i32) {
    %c0_i32 = arith.constant 0 : i32
    %c0_i32_0 = arith.constant 0 : i32
    return %arg0, %c0_i32 : i32, i32
  }
  func.func @transform_1(%arg0: i32) -> (i32, i32) {
    %c0_i32 = arith.constant 0 : i32
    %c0_i32_0 = arith.constant 0 : i32
    return %arg0, %c0_i32 : i32, i32
  }
  func.func @transform_2(%arg0: i32) -> (i32, i32) {
    %c0_i32 = arith.constant 0 : i32
    %c0_i32_0 = arith.constant 0 : i32
    return %arg0, %c0_i32 : i32, i32
  }
  func.func @transform_3(%arg0: i32) -> (i32, i32) {
    %c0_i32 = arith.constant 0 : i32
    %c0_i32_0 = arith.constant 0 : i32
    %c0_i32_1 = arith.constant 0 : i32
    return %c0_i32, %c0_i32_0 : i32, i32
  }
  func.func @transform_4(%arg0: i32) -> (i32, i32) {
    %c0_i32 = arith.constant 0 : i32
    %c0_i32_0 = arith.constant 0 : i32
    %c0_i32_1 = arith.constant 0 : i32
    return %c0_i32, %c0_i32_0 : i32, i32
  }
  func.func @transform_5(%arg0: i32) -> (i32, i32) {
    %c0_i32 = arith.constant 0 : i32
    %c0_i32_0 = arith.constant 0 : i32
    %c0_i32_1 = arith.constant 0 : i32
    return %c0_i32, %c0_i32_0 : i32, i32
  }
  func.func @transform_6(%arg0: i32) -> (i32, i32) {
    %c0_i32 = arith.constant 0 : i32
    %c0_i32_0 = arith.constant 0 : i32
    return %arg0, %c0_i32 : i32, i32
  }
  func.func @transform_7(%arg0: i32) -> (i32, i32) {
    %c0_i32 = arith.constant 0 : i32
    %c0_i32_0 = arith.constant 0 : i32
    return %arg0, %c0_i32 : i32, i32
  }
}

</mosaic_0001>

<llo_original>
// kernel: tpu_custom_call.1
$region0: #{tpu_custom_call.1}
  #allocation0 [shape = 'u32[]', space=smem, size = 0x4, offset = 0x4, fixed_abs, tag = 'smem constant byte address 0x4 - core index']
  #allocation1 [shape = 'u32[144,128]{1,0:T(1,128)}', space=vmem, size = 0x12000, scoped, tag = 'internal scratch']
  %s0 = inlined_call_operand.hbm [shape: f32[8,32], index: 0, kind: input, shape index: {}]
  %s1 = inlined_call_operand.hbm [shape: f32[8,32], index: 1, kind: input, shape index: {}]
  %s2 = inlined_call_operand.hbm [shape: f32[8,32], index: 2, kind: input, shape index: {}]
  %s3 = inlined_call_operand.hbm [shape: f32[32,128], index: 3, kind: input, shape index: {}]
  %s4 = inlined_call_operand.hbm [shape: f32[32,128], index: 4, kind: input, shape index: {}]
  %s5 = inlined_call_operand.vmem [shape: f32[1,128], index: 5, kind: input, shape index: {}]
  %s6 = inlined_call_operand.hbm [shape: f32[8,32], index: 6, kind: output, shape index: {0}]
  %s7 = inlined_call_operand.hbm [shape: f32[8,32], index: 7, kind: output, shape index: {1}]
  %8 = xla_tuple %s6, %s7
  %s9 = sld [smem:[#allocation0]]
  $region62: #{tpu_custom_call.1} parent=0
    _
  %s11 = ssub.s32 1, %s9
  %s12 = scalar_select 0, %s11, %s9
  $region1: #{tpu_custom_call.1} parent=0
    #allocation2 [shape = 'u8[4096]{0}', space=vmem, size = 0x1000, scoped, tag = 'input window, operand 0, single buffered']
    #allocation3 [shape = 's32[1]{0}', space=sflag, size = 0x4, scoped, tag = 'scoped memory for tpu_custom_call.1']
    #allocation4 [shape = 's32[1]{0}', space=sflag, size = 0x4, scoped, tag = 'scoped memory for tpu_custom_call.1']
    #allocation5 [shape = 'u8[4096]{0}', space=vmem, size = 0x1000, scoped, tag = 'input window, operand 1, single buffered']
    #allocation6 [shape = 's32[1]{0}', space=sflag, size = 0x4, scoped, tag = 'scoped memory for tpu_custom_call.1']
    #allocation7 [shape = 'u8[4096]{0}', space=vmem, size = 0x1000, scoped, tag = 'input window, operand 2, single buffered']
    #allocation8 [shape = 'u8[16384]{0}', space=vmem, size = 0x4000, scoped, tag = 'input window, operand 3, single buffered']
    #allocation9 [shape = 's32[1]{0}', space=sflag, size = 0x4, scoped, tag = 'scoped memory for tpu_custom_call.1']
    #allocation10 [shape = 'u8[16384]{0}', space=vmem, size = 0x4000, scoped, tag = 'input window, operand 4, single buffered']
    #allocation11 [shape = 'u8[4096]{0}', space=vmem, size = 0x1000, scoped, tag = 'output window, operand 0, single buffered']
    #allocation12 [shape = 'u8[4096]{0}', space=vmem, size = 0x1000, scoped, tag = 'output window, operand 1, single buffered']
    #allocation13 [shape = 's32[1]{0}', space=sflag, size = 0x4, scoped, tag = 'scoped memory for tpu_custom_call.1']
    %13 = vsyncpa [#allocation3], 0
    %14 = vsyncpa [#allocation6], 0
    %15 = vsyncpa [#allocation9], 0
    %16 = vsyncpa [#allocation4], 0
    %17 = vsyncpa [#allocation13], 0
    // Predicated region
    $region2: #{tpu_custom_call.1} parent=1 // pred_check
      _
    $region3: #{tpu_custom_call.1} parent=1 // pred_check_branch
      %19 = sbr.rel (0) target = $region5
    $region4: #{tpu_custom_call.1} parent=1 // pred_region
      %s21 = ssub.s32 128, 128
      %22 = vsyncadd [#allocation3], %s21
      %s24 = sshll.u32 [#allocation2], 4
      %s25 = int_to_ptr.vmem [resolvable:$true] %s24
      %27 = dma.hbm_to_vmem [thread:$0]  %s0, 128, %s25, [#allocation3]
    $region5: #{tpu_custom_call.1} parent=1 // pred_fallthru
      _
    // Predicated region
    $region6: #{tpu_custom_call.1} parent=1 // pred_check
      _
    $region7: #{tpu_custom_call.1} parent=1 // pred_check_branch
      %29 = sbr.rel (0) target = $region9
    $region8: #{tpu_custom_call.1} parent=1 // pred_region
      %s31 = ssub.s32 128, 128
      %32 = vsyncadd [#allocation6], %s31
      %s34 = sshll.u32 [#allocation5], 4
      %s35 = int_to_ptr.vmem [resolvable:$true] %s34
      %37 = dma.hbm_to_vmem [thread:$0]  %s1, 128, %s35, [#allocation6]
    $region9: #{tpu_custom_call.1} parent=1 // pred_fallthru
      _
    // Predicated region
    $region10: #{tpu_custom_call.1} parent=1 // pred_check
      _
    $region11: #{tpu_custom_call.1} parent=1 // pred_check_branch
      %39 = sbr.rel (0) target = $region13
    $region12: #{tpu_custom_call.1} parent=1 // pred_region
      %s41 = ssub.s32 128, 128
      %42 = vsyncadd [#allocation6], %s41
      %s44 = sshll.u32 [#allocation7], 4
      %s45 = int_to_ptr.vmem [resolvable:$true] %s44
      %47 = dma.hbm_to_vmem [thread:$0]  %s2, 128, %s45, [#allocation6]
    $region13: #{tpu_custom_call.1} parent=1 // pred_fallthru
      _
    // Predicated region
    $region14: #{tpu_custom_call.1} parent=1 // pred_check
      _
    $region15: #{tpu_custom_call.1} parent=1 // pred_check_branch
      %49 = sbr.rel (0) target = $region17
    $region16: #{tpu_custom_call.1} parent=1 // pred_region
      %s51 = ssub.s32 512, 512
      %52 = vsyncadd [#allocation9], %s51
      %s53 = sshll.u32 [#allocation8], 4
      %s54 = int_to_ptr.vmem [resolvable:$true] %s53
      %59 = dma.hbm_to_vmem [thread:$0]  %s3, 512, %s54, [#allocation9], 128, 128, 8
    $region17: #{tpu_custom_call.1} parent=1 // pred_fallthru
      _
    // Predicated region
    $region18: #{tpu_custom_call.1} parent=1 // pred_check
      _
    $region19: #{tpu_custom_call.1} parent=1 // pred_check_branch
      %61 = sbr.rel (0) target = $region21
    $region20: #{tpu_custom_call.1} parent=1 // pred_region
      %s63 = ssub.s32 512, 512
      %64 = vsyncadd [#allocation9], %s63
      %s65 = sshll.u32 [#allocation10], 4
      %s66 = int_to_ptr.vmem [resolvable:$true] %s65
      %71 = dma.hbm_to_vmem [thread:$0]  %s4, 512, %s66, [#allocation9], 128, 128, 8
    $region21: #{tpu_custom_call.1} parent=1 // pred_fallthru
      _
    // Predicated region
    $region22: #{tpu_custom_call.1} parent=1 // pred_check
      _
    $region23: #{tpu_custom_call.1} parent=1 // pred_check_branch
      %73 = sbr.rel (0) target = $region25
    $region24: #{tpu_custom_call.1} parent=1 // pred_region
      _
    $region25: #{tpu_custom_call.1} parent=1 // pred_fallthru
      _
    // Predicated region
    $region26: #{tpu_custom_call.1} parent=1 // pred_check
      _
    $region27: #{tpu_custom_call.1} parent=1 // pred_check_branch
      %75 = sbr.rel (0) target = $region29
    $region28: #{tpu_custom_call.1} parent=1 // pred_region
      %76 = dma.done [#allocation3], 128
    $region29: #{tpu_custom_call.1} parent=1 // pred_fallthru
      _
    // Predicated region
    $region30: #{tpu_custom_call.1} parent=1 // pred_check
      _
    $region31: #{tpu_custom_call.1} parent=1 // pred_check_branch
      %78 = sbr.rel (0) target = $region33
    $region32: #{tpu_custom_call.1} parent=1 // pred_region
      %79 = dma.done [#allocation6], 128
    $region33: #{tpu_custom_call.1} parent=1 // pred_fallthru
      _
    // Predicated region
    $region34: #{tpu_custom_call.1} parent=1 // pred_check
      _
    $region35: #{tpu_custom_call.1} parent=1 // pred_check_branch
      %81 = sbr.rel (0) target = $region37
    $region36: #{tpu_custom_call.1} parent=1 // pred_region
      %82 = dma.done [#allocation6], 128
    $region37: #{tpu_custom_call.1} parent=1 // pred_fallthru
      _
    // Predicated region
    $region38: #{tpu_custom_call.1} parent=1 // pred_check
      _
    $region39: #{tpu_custom_call.1} parent=1 // pred_check_branch
      %84 = sbr.rel (0) target = $region41
    $region40: #{tpu_custom_call.1} parent=1 // pred_region
      %85 = dma.done [#allocation9], 512
    $region41: #{tpu_custom_call.1} parent=1 // pred_fallthru
      _
    // Predicated region
    $region42: #{tpu_custom_call.1} parent=1 // pred_check
      _
    $region43: #{tpu_custom_call.1} parent=1 // pred_check_branch
      %87 = sbr.rel (0) target = $region45
    $region44: #{tpu_custom_call.1} parent=1 // pred_region
      %88 = dma.done [#allocation9], 512
    $region45: #{tpu_custom_call.1} parent=1 // pred_fallthru
      _
    %v89 = vld [vmem:[#allocation2] sm:$0xff]
    %v90 = vld [vmem:[#allocation8] sm:$0xff]
    %v91 = vld [vmem:[#allocation8 + $0x8] sm:$0xff]
    %v92 = vld [vmem:[#allocation8 + $0x10] sm:$0xff]
    %v93 = vld [vmem:[#allocation8 + $0x18] sm:$0xff]
    %v94 = vld [vmem:[#allocation5] sm:$0xff]
    %v95 = vld [vmem:[#allocation10] sm:$0xff]
    %v96 = vld [vmem:[#allocation10 + $0x8] sm:$0xff]
    %v97 = vld [vmem:[#allocation10 + $0x10] sm:$0xff]
    %v98 = vld [vmem:[#allocation10 + $0x18] sm:$0xff]
    %vm99 = vcmask 261120
    %v101 = vsel %vm99, %v94, 0
    %103 = vmatprep.subr.mxu0 0.0
    %104 = vmatpush1.msra.mxu0 0.0
    %105 = vmatprep.subr.mxu0 0.0
    %106 = vmatpush1.msra.mxu0 0.0
    %107 = vmatprep.subr.mxu0 0.0
    %108 = vmatpush1.msra.mxu0 0.0
    %109 = vmatprep.subr.mxu0 0.0
    %110 = vmatpush1.msra.mxu0 0.0
    %111 = vmatprep.subr.mxu0 0.0
    %112 = vmatpush1.msra.mxu0 0.0
    %113 = vmatprep.subr.mxu0 0.0
    %114 = vmatpush1.msra.mxu0 0.0
    %115 = vmatprep.subr.mxu0 0.0
    %116 = vmatpush1.msra.mxu0 0.0
    %117 = vmatprep.subr.mxu0 0.0
    %118 = vmatpush1.msra.mxu0 0.0
    %119 = vmatprep.subr.mxu0 0.0
    %120 = vmatpush1.msra.mxu0 0.0
    %121 = vmatprep.subr.mxu0 0.0
    %122 = vmatpush1.msra.mxu0 0.0
    %123 = vmatprep.subr.mxu0 0.0
    %124 = vmatpush1.msra.mxu0 0.0
    %125 = vmatprep.subr.mxu0 0.0
    %126 = vmatpush1.msra.mxu0 0.0
    %127 = vmatprep.subr.mxu0 0.0
    %128 = vmatpush1.msra.mxu0 %v98
    %129 = vmatprep.subr.mxu0 0.0
    %130 = vmatpush1.msra.mxu0 %v97
    %131 = vmatprep.subr.mxu0 0.0
    %132 = vmatpush1.msra.mxu0 %v96
    %133 = vmatprep.subr.mxu0 0.0
    %134 = vmatpush1.msra.mxu0 %v95
    %135 = vmatprep.subr.mxu0 0.0
    %136 = vmatpush2.msra.mxu0 0.0
    %137 = vmatprep.subr.mxu0 0.0
    %138 = vmatpush2.msra.mxu0 0.0
    %139 = vmatprep.subr.mxu0 0.0
    %140 = vmatpush2.msra.mxu0 0.0
    %141 = vmatprep.subr.mxu0 0.0
    %142 = vmatpush2.msra.mxu0 0.0
    %143 = vmatprep.subr.mxu0 0.0
    %144 = vmatpush2.msra.mxu0 0.0
    %145 = vmatprep.subr.mxu0 0.0
    %146 = vmatpush2.msra.mxu0 0.0
    %147 = vmatprep.subr.mxu0 0.0
    %148 = vmatpush2.msra.mxu0 0.0
    %149 = vmatprep.subr.mxu0 0.0
    %150 = vmatpush2.msra.mxu0 0.0
    %151 = vmatprep.subr.mxu0 0.0
    %152 = vmatpush2.msra.mxu0 0.0
    %153 = vmatprep.subr.mxu0 0.0
    %154 = vmatpush2.msra.mxu0 0.0
    %155 = vmatprep.subr.mxu0 0.0
    %156 = vmatpush2.msra.mxu0 0.0
    %157 = vmatprep.subr.mxu0 0.0
    %158 = vmatpush2.msra.mxu0 0.0
    %159 = vmatprep.subr.mxu0 0.0
    %160 = vmatpush2.msra.mxu0 0.0
    %161 = vmatprep.subr.mxu0 0.0
    %162 = vmatpush2.msra.mxu0 0.0
    %163 = vmatprep.subr.mxu0 0.0
    %164 = vmatpush2.msra.mxu0 0.0
    %165 = vmatprep.subr.mxu0 0.0
    %166 = vmatpush2.msra.mxu0 0.0
    %167 = vmatprep.mubr.f32.mxu0 0.0
    %168 = vmatmul.mubr.f32.gmra.mxu0 %v101
    %v169 = vpop.f32.mrf.mxu0
    %v170 = vadd.f32 0.0, %v169
    %v171 = vpop.f32.mrf.mxu0
    %172 = vdwg.mxu0
    %v174 = vsel %vm99, %v89, 0
    %176 = vmatprep.subr.mxu0 0.0
    %177 = vmatpush1.msra.mxu0 0.0
    %178 = vmatprep.subr.mxu0 0.0
    %179 = vmatpush1.msra.mxu0 0.0
    %180 = vmatprep.subr.mxu0 0.0
    %181 = vmatpush1.msra.mxu0 0.0
    %182 = vmatprep.subr.mxu0 0.0
    %183 = vmatpush1.msra.mxu0 0.0
    %184 = vmatprep.subr.mxu0 0.0
    %185 = vmatpush1.msra.mxu0 0.0
    %186 = vmatprep.subr.mxu0 0.0
    %187 = vmatpush1.msra.mxu0 0.0
    %188 = vmatprep.subr.mxu0 0.0
    %189 = vmatpush1.msra.mxu0 0.0
    %190 = vmatprep.subr.mxu0 0.0
    %191 = vmatpush1.msra.mxu0 0.0
    %192 = vmatprep.subr.mxu0 0.0
    %193 = vmatpush1.msra.mxu0 0.0
    %194 = vmatprep.subr.mxu0 0.0
    %195 = vmatpush1.msra.mxu0 0.0
    %196 = vmatprep.subr.mxu0 0.0
    %197 = vmatpush1.msra.mxu0 0.0
    %198 = vmatprep.subr.mxu0 0.0
    %199 = vmatpush1.msra.mxu0 0.0
    %200 = vmatprep.subr.mxu0 0.0
    %201 = vmatpush1.msra.mxu0 %v93
    %202 = vmatprep.subr.mxu0 0.0
    %203 = vmatpush1.msra.mxu0 %v92
    %204 = vmatprep.subr.mxu0 0.0
    %205 = vmatpush1.msra.mxu0 %v91
    %206 = vmatprep.subr.mxu0 0.0
    %207 = vmatpush1.msra.mxu0 %v90
    %208 = vmatprep.subr.mxu0 0.0
    %209 = vmatpush2.msra.mxu0 0.0
    %210 = vmatprep.subr.mxu0 0.0
    %211 = vmatpush2.msra.mxu0 0.0
    %212 = vmatprep.subr.mxu0 0.0
    %213 = vmatpush2.msra.mxu0 0.0
    %214 = vmatprep.subr.mxu0 0.0
    %215 = vmatpush2.msra.mxu0 0.0
    %216 = vmatprep.subr.mxu0 0.0
    %217 = vmatpush2.msra.mxu0 0.0
    %218 = vmatprep.subr.mxu0 0.0
    %219 = vmatpush2.msra.mxu0 0.0
    %220 = vmatprep.subr.mxu0 0.0
    %221 = vmatpush2.msra.mxu0 0.0
    %222 = vmatprep.subr.mxu0 0.0
    %223 = vmatpush2.msra.mxu0 0.0
    %224 = vmatprep.subr.mxu0 0.0
    %225 = vmatpush2.msra.mxu0 0.0
    %226 = vmatprep.subr.mxu0 0.0
    %227 = vmatpush2.msra.mxu0 0.0
    %228 = vmatprep.subr.mxu0 0.0
    %229 = vmatpush2.msra.mxu0 0.0
    %230 = vmatprep.subr.mxu0 0.0
    %231 = vmatpush2.msra.mxu0 0.0
    %232 = vmatprep.subr.mxu0 0.0
    %233 = vmatpush2.msra.mxu0 0.0
    %234 = vmatprep.subr.mxu0 0.0
    %235 = vmatpush2.msra.mxu0 0.0
    %236 = vmatprep.subr.mxu0 0.0
    %237 = vmatpush2.msra.mxu0 0.0
    %238 = vmatprep.subr.mxu0 0.0
    %239 = vmatpush2.msra.mxu0 0.0
    %240 = vmatprep.mubr.f32.mxu0 0.0
    %241 = vmatmul.mubr.f32.gmra.mxu0 %v174
    %v242 = vpop.f32.mrf.mxu0
    %v243 = vadd.f32 %v170, %v242
    %v244 = vpop.f32.mrf.mxu0
    %245 = vdwg.mxu0
    %v246 = vld [vmem:[%s5] sm:$0x1]
    %v248 = vlaneseq
    %v249 = vshrl.u32 %v248, 7
    %v250 = vsub.s32 0, %v249
    %v251 = vrot.slane %v246, %v250
    %v253 = vadd.f32 %v243, %v251
    %v254 = vxor.u32 %v253, 2147483648
    %v255 = vmul.f32 %v254, 1.442695
    %v256 = vpow.pop %v255
    %v257 = vadd.f32 %v256, 1.0
    %v258 = vrcp.pop %v257
    %v259 = vmul.f32 1.0, %v258
    %v260 = vtanh.pop %v253
    %v261 = vld [vmem:[#allocation7] sm:$0xff]
    %263 = vrot.lane.b32.xlu0 %v261, 32
    %v264 = vpop.permute.xlu0 %263
    %v266 = vmul.f32 %v259, %v264
    %268 = vrot.lane.b32.xlu0 %v260, 32
    %v269 = vpop.permute.xlu0 %268
    %v271 = vmul.f32 %v259, %v269
    %273 = vrot.lane.b32.xlu0 %v271, 32
    %v274 = vpop.permute.xlu0 %273
    %v276 = vadd.f32 %v266, %v274
    %v277 = vtanh.pop %v276
    %279 = vrot.lane.b32.xlu0 %v277, 32
    %v280 = vpop.permute.xlu0 %279
    %v282 = vmul.f32 %v259, %v280
    %284 = vrot.lane.b32.xlu0 %v282, 64
    %v285 = vpop.permute.xlu0 %284
    %287 = vst.msk [vmem:[#allocation11] sm:$0xff] %vm99, %v285
    %289 = vrot.lane.b32.xlu0 %v276, 96
    %v290 = vpop.permute.xlu0 %289
    %292 = vst.msk [vmem:[#allocation12] sm:$0xff] %vm99, %v290
    // Predicated region
    $region46: #{tpu_custom_call.1} parent=1 // pred_check
      _
    $region47: #{tpu_custom_call.1} parent=1 // pred_check_branch
      %294 = sbr.rel (0) target = $region49
    $region48: #{tpu_custom_call.1} parent=1 // pred_region
      %s296 = ssub.s32 128, 128
      %297 = vsyncadd [#allocation4], %s296
      %s299 = sshll.u32 [#allocation11], 4
      %s300 = int_to_ptr.vmem [resolvable:$true] %s299
      %302 = dma.vmem_to_hbm [thread:$0]  %s300, 128, %s6, [#allocation4]
    $region49: #{tpu_custom_call.1} parent=1 // pred_fallthru
      _
    // Predicated region
    $region50: #{tpu_custom_call.1} parent=1 // pred_check
      _
    $region51: #{tpu_custom_call.1} parent=1 // pred_check_branch
      %304 = sbr.rel (0) target = $region53
    $region52: #{tpu_custom_call.1} parent=1 // pred_region
      %s306 = ssub.s32 128, 128
      %307 = vsyncadd [#allocation13], %s306
      %s309 = sshll.u32 [#allocation12], 4
      %s310 = int_to_ptr.vmem [resolvable:$true] %s309
      %312 = dma.vmem_to_hbm [thread:$0]  %s310, 128, %s7, [#allocation13]
    $region53: #{tpu_custom_call.1} parent=1 // pred_fallthru
      _
    // Predicated region
    $region54: #{tpu_custom_call.1} parent=1 // pred_check
      _
    $region55: #{tpu_custom_call.1} parent=1 // pred_check_branch
      %314 = sbr.rel (0) target = $region57
    $region56: #{tpu_custom_call.1} parent=1 // pred_region
      %315 = dma.done [#allocation4], 128
    $region57: #{tpu_custom_call.1} parent=1 // pred_fallthru
      _
    // Predicated region
    $region58: #{tpu_custom_call.1} parent=1 // pred_check
      _
    $region59: #{tpu_custom_call.1} parent=1 // pred_check_branch
      %317 = sbr.rel (0) target = $region61
    $region60: #{tpu_custom_call.1} parent=1 // pred_region
      %318 = dma.done [#allocation13], 128
    $region61: #{tpu_custom_call.1} parent=1 // pred_fallthru
      _
    %319 = vsyncpa [#allocation3], 1
    %320 = vsyncpa [#allocation6], 1
    %321 = vsyncpa [#allocation9], 1
    %322 = vsyncpa [#allocation4], 1
    %323 = vsyncpa [#allocation13], 1

</llo_original>
